<compile_context>
chip_gen: v6e
topology: v6e:2x2x1
jax: 0.10.0
libtpu: 0.0.40
codegen_flags: <defaults>
</compile_context>

<pallas_src>
import functools

import jax
import jax.numpy as jnp
from jax import lax
from jax.experimental import pallas as pl
from jax.experimental.pallas import tpu as pltpu


def _round_up(n, m):
    return (n + m - 1) // m * m


def _pick_spatial_tile(L, target=512):
    """Largest multiple of 128 <= target that divides L; else the full L."""
    if L <= target:
        return L
    t = (target // 128) * 128
    while t >= 128:
        if L % t == 0:
            return t
        t -= 128
    return L


# --------------------------------------------------------------------------
# Fused pose-head matmul + soft-argmax decode kernel.
# grid = (B, L // TL): batch axis is "parallel", spatial axis is an
# "arbitrary" reduction carried in VMEM scratch accumulators.
# --------------------------------------------------------------------------
def _fused_pose_decode_kernel(patches_ref, w_ref, b_ref, coeff_ref, o_ref,
                              acc_ref, max_ref, *, stride):
    # patches_ref: (1, TL, D)  bf16 im2col patches (one batch, one L tile)
    # w_ref:       (D, Kp)     bf16 conv weight as matmul RHS (K padded to 128)
    # b_ref:       (1, Kp)     f32 padded bias
    # coeff_ref:   (8, TL)     f32 rows [ones, x-coord, y-coord, 0...] (global coords)
    # o_ref:       (1, 8, Kp)  f32 output slab; rows 0..2 = [hmx, hmy, conf]
    # acc_ref:     (8, Kp)     f32 running [sum, xmom, ymom, ...] accumulator
    # max_ref:     (1, Kp)     f32 running max of pre-sigmoid logits
    li = pl.program_id(1)

    @pl.when(li == 0)
    def _init():
        acc_ref[...] = jnp.zeros_like(acc_ref)
        max_ref[...] = jnp.full_like(max_ref, -jnp.inf)

    # bf16 x bf16 -> f32 accumulation on the MXU.
    hm = jnp.dot(patches_ref[0], w_ref[...],
                 preferred_element_type=jnp.float32) + b_ref[...]      # (TL, Kp)

    # Confidence from pre-sigmoid logits (sigmoid is monotone), so the max
    # tree overlaps with the EUP sigmoid pushes instead of waiting on them.
    max_ref[...] = jnp.maximum(max_ref[...],
                               jnp.max(hm, axis=0, keepdims=True))     # (1, Kp)

    prob = jax.nn.sigmoid(hm)                                          # (TL, Kp)

    # sum / x-moment / y-moment of this tile in one MXU matmul:
    # (8, TL) @ (TL, Kp) -> (8, Kp), accumulated over L tiles.
    acc_ref[...] += jnp.dot(coeff_ref[...], prob,
                            preferred_element_type=jnp.float32)

    @pl.when(li == pl.num_programs(1) - 1)
    def _finalize():
        red = acc_ref[...]
        inv = 1.0 / red[0:1, :]                 # exact reciprocal (accuracy)
        o_ref[0, 0:1, :] = red[1:2, :] * inv * float(stride)   # hmx
        o_ref[0, 1:2, :] = red[2:3, :] * inv * float(stride)   # hmy
        o_ref[0, 2:3, :] = jax.nn.sigmoid(max_ref[...])        # confidence
        # rows 3..7 of the slab are never read by the wrapper.


# --------------------------------------------------------------------------
# Wrapper
# --------------------------------------------------------------------------
def alphapose_forward(x, weight, bias, *, stride=4):
    """x: (B, C, H, W) f32 NCHW. weight: (K, C, s, s). bias: (K,).

    Returns (B, K, 3) = [x_coord, y_coord, confidence] per keypoint.
    """
    B, C, H, W = x.shape
    K = weight.shape[0]
    s = stride
    assert H % s == 0 and W % s == 0, "pose-head stride must divide H and W"
    h, w = H // s, W // s
    L = h * w
    D = C * s * s
    Kp = _round_up(K, 128)
    TL = _pick_spatial_tile(L)
    nL = L // TL

    # stride exactly as the reference computes it (input height / heatmap height)
    stride_eff = H // h

    # ---- glue: per-batch im2col for the strided pose-head conv ----
    # bf16 up front (half the transpose/DMA bytes), NO padding of D.
    # TODO(synk): the wrapper transpose could be removed entirely by doing the
    # strided conv in-kernel as s*s accumulated matmuls over slices of x.
    patches = x.astype(jnp.bfloat16).reshape(B, C, h, s, w, s)
    patches = patches.transpose(0, 2, 4, 1, 3, 5).reshape(B, L, D)     # (B, L, D) bf16

    wmat = weight.reshape(K, D).T                                      # (D, K)
    wmat = jnp.pad(wmat, ((0, 0), (0, Kp - K))).astype(jnp.bfloat16)   # (D, Kp) bf16
    bvec = jnp.pad(bias.reshape(1, K), ((0, 0), (0, Kp - K)))          # (1, Kp) f32

    # coefficient matrix for the MXU reductions: rows = [1, x, y, 0...]
    idx = jnp.arange(L, dtype=jnp.int32)
    coeff = jnp.concatenate([
        jnp.ones((1, L), jnp.float32),
        (idx % w).astype(jnp.float32).reshape(1, L),   # x coordinate (col)
        (idx // w).astype(jnp.float32).reshape(1, L),  # y coordinate (row)
        jnp.zeros((5, L), jnp.float32),
    ], axis=0)                                                          # (8, L)

    cost = pl.CostEstimate(
        flops=2 * B * L * D * Kp + 2 * B * L * 8 * Kp,
        transcendentals=B * L * Kp + B * Kp,
        bytes_accessed=(B * L * D * 2 + D * Kp * 2 + Kp * 4
                        + 8 * L * 4 + B * 8 * Kp * 4),
    )

    out_slab = pl.pallas_call(
        functools.partial(_fused_pose_decode_kernel, stride=stride_eff),
        out_shape=jax.ShapeDtypeStruct((B, 8, Kp), jnp.float32),
        grid=(B, nL),
        in_specs=[
            pl.BlockSpec((1, TL, D), lambda b, l: (b, l, 0)),
            # TODO(synk): pipeline_mode=pl.Buffered(1) on the three invariant
            # operands below would drop their second VMEM buffer (v7x hygiene).
            pl.BlockSpec((D, Kp), lambda b, l: (0, 0)),
            pl.BlockSpec((1, Kp), lambda b, l: (0, 0)),
            pl.BlockSpec((8, TL), lambda b, l: (0, l)),
        ],
        out_specs=pl.BlockSpec((1, 8, Kp), lambda b, l: (b, 0, 0)),
        scratch_shapes=[pltpu.VMEM((8, Kp), jnp.float32),
                        pltpu.VMEM((1, Kp), jnp.float32)],
        compiler_params=pltpu.CompilerParams(
            dimension_semantics=("parallel", "arbitrary"),
            vmem_limit_bytes=32 * 1024 * 1024),
        cost_estimate=cost,
    )(patches, wmat, bvec, coeff)

    # (B, 8, Kp) lane-dense slab -> (B, K, 3) = [x, y, conf]
    res = out_slab[:, :3, :K]                  # (B, 3, K)
    return jnp.transpose(res, (0, 2, 1))       # (B, K, 3)


# --------------------------------------------------------------------------
# Pure-JAX reference (mirrors the PyTorch forward) for verification
# --------------------------------------------------------------------------
def _reference(x, weight, bias, stride=4):
    hm = lax.conv_general_dilated(
        x, weight, window_strides=(stride, stride), padding='VALID',
        dimension_numbers=('NCHW', 'OIHW', 'NCHW')) + bias[None, :, None, None]
    b, c, h, w = hm.shape
    st = x.shape[2] // h
    prob = jax.nn.sigmoid(hm)
    conf = prob.reshape(b, c, h * w).max(axis=2, keepdims=True)
    probn = prob / prob.sum(axis=(2, 3), keepdims=True)
    coordx = jnp.arange(w, dtype=jnp.float32)
    coordy = jnp.arange(h, dtype=jnp.float32)
    hmx = (probn.sum(axis=2) * coordx).sum(axis=2, keepdims=True) * st
    hmy = (probn.sum(axis=3) * coordy).sum(axis=2, keepdims=True) * st
    return jnp.concatenate([hmx, hmy, conf], axis=2)


if __name__ == "__main__":
    key = jax.random.PRNGKey(0)
    kx, kw, kb = jax.random.split(key, 3)

    B, C, H, W = 2, 4, 16, 16      # small NCHW input
    K = 8                          # keypoint channels (halpe_136 -> 136 in real model)
    STRIDE = 4                     # FastPose: 256 -> 64 heatmaps (stride 4)

    x = jax.random.normal(kx, (B, C, H, W), dtype=jnp.float32)
    weight = 0.1 * jax.random.normal(kw, (K, C, STRIDE, STRIDE), dtype=jnp.float32)
    bias = 0.1 * jax.random.normal(kb, (K,), dtype=jnp.float32)

    out = jax.block_until_ready(alphapose_forward(x, weight, bias, stride=STRIDE))
    assert out.shape == (B, K, 3), out.shape

    # Strict check: kernel must match the reference evaluated on bf16-rounded
    # inputs (the only intended numerical difference is the bf16 input cast;
    # accumulation stays f32 in both).
    xq = x.astype(jnp.bfloat16).astype(jnp.float32)
    wq = weight.astype(jnp.bfloat16).astype(jnp.float32)
    ref_bf16 = jax.block_until_ready(_reference(xq, wq, bias, STRIDE))
    assert jnp.allclose(out, ref_bf16, atol=1e-3, rtol=1e-3), (
        float(jnp.max(jnp.abs(out - ref_bf16))))

    # Loose sanity check against the full-f32 reference (bounds the bf16 error).
    ref_f32 = jax.block_until_ready(_reference(x, weight, bias, STRIDE))
    assert jnp.allclose(out, ref_f32, atol=5e-2, rtol=5e-2), (
        float(jnp.max(jnp.abs(out - ref_f32))))

    print("KERNEL_OK")
</pallas_src>

<mosaic_0001>
module attributes {stable_mosaic.version = 11 : i64} {
  func.func @_fused_pose_decode_kernel(%arg0: i32, %arg1: i32, %arg2: memref<1x16x64xbf16, #tpu.memory_space<vmem>>, %arg3: memref<64x128xbf16, #tpu.memory_space<vmem>>, %arg4: memref<1x128xf32, #tpu.memory_space<vmem>>, %arg5: memref<8x16xf32, #tpu.memory_space<vmem>>, %arg6: memref<1x8x128xf32, #tpu.memory_space<vmem>>, %arg7: memref<8x128xf32, #tpu.memory_space<vmem>>, %arg8: memref<1x128xf32, #tpu.memory_space<vmem>>) attributes {dimension_semantics = [#tpu.dimension_semantics<parallel>, #tpu.dimension_semantics<arbitrary>], iteration_bounds = array<i64: 2, 1>, scalar_prefetch = 0 : i64, scratch_operands = 2 : i64, tpu.core_type = #tpu.core_type<tc>, window_params = [{transform_indices = @transform_0, window_bounds = array<i64: 1, 16, 64>}, {pipeline_mode = #tpu.pipeline_mode<synchronous>, transform_indices = @transform_1, window_bounds = array<i64: 64, 128>}, {pipeline_mode = #tpu.pipeline_mode<synchronous>, transform_indices = @transform_2, window_bounds = array<i64: 1, 128>}, {transform_indices = @transform_3, window_bounds = array<i64: 8, 16>}, {transform_indices = @transform_4, window_bounds = array<i64: 1, 8, 128>}]} {
    %c0_i32 = arith.constant 0 : i32
    %0 = arith.cmpi eq, %arg1, %c0_i32 : i32
    %1 = arith.extui %0 : i1 to i32
    %c0_i32_0 = arith.constant 0 : i32
    %2 = arith.cmpi ne, %1, %c0_i32_0 : i32
    scf.if %2 {
      %cst_22 = arith.constant 0.000000e+00 : f32
      %28 = vector.broadcast %cst_22 : f32 to vector<8x128xf32>
      %c0_23 = arith.constant 0 : index
      %c0_24 = arith.constant 0 : index
      %29 = vector.load %arg7[%c0_23, %c0_24] : memref<8x128xf32, #tpu.memory_space<vmem>>, vector<8x128xf32>
      tpu.vector_store %arg7[%c0_23, %c0_24], %28 {strides = array<i32>} : memref<8x128xf32, #tpu.memory_space<vmem>>, vector<8x128xf32>,
      %cst_25 = arith.constant 0xFF800000 : f32
      %30 = vector.broadcast %cst_25 : f32 to vector<1x128xf32>
      %c0_26 = arith.constant 0 : index
      %c0_27 = arith.constant 0 : index
      %31 = vector.load %arg8[%c0_26, %c0_27] : memref<1x128xf32, #tpu.memory_space<vmem>>, vector<1x128xf32>
      tpu.vector_store %arg8[%c0_26, %c0_27], %30 {strides = array<i32>} : memref<1x128xf32, #tpu.memory_space<vmem>>, vector<1x128xf32>,
    } else {
    }
    %c0 = arith.constant 0 : index
    %c0_1 = arith.constant 0 : index
    %c0_2 = arith.constant 0 : index
    %3 = vector.load %arg2[%c0, %c0_1, %c0_2] : memref<1x16x64xbf16, #tpu.memory_space<vmem>>, vector<1x16x64xbf16>
    %4 = vector.shape_cast %3 : vector<1x16x64xbf16> to vector<16x64xbf16>
    %c0_3 = arith.constant 0 : index
    %c0_4 = arith.constant 0 : index
    %5 = vector.load %arg3[%c0_3, %c0_4] : memref<64x128xbf16, #tpu.memory_space<vmem>>, vector<64x128xbf16>
    %cst = arith.constant dense<0.000000e+00> : vector<16x128xf32>
    %6 = tpu.matmul %4, %5, %cst {dimension_numbers = #tpu.dot_dimension_numbers<[1], [0], [0], [1], [0, 0, 1, 1], [], []>} : vector<16x64xbf16>, vector<64x128xbf16>, vector<16x128xf32> -> vector<16x128xf32>
    %c0_5 = arith.constant 0 : index
    %c0_6 = arith.constant 0 : index
    %7 = vector.load %arg4[%c0_5, %c0_6] : memref<1x128xf32, #tpu.memory_space<vmem>>, vector<1x128xf32>
    %8 = vector.broadcast %7 : vector<1x128xf32> to vector<16x128xf32>
    %9 = arith.addf %6, %8 : vector<16x128xf32>
    %c0_7 = arith.constant 0 : index
    %c0_8 = arith.constant 0 : index
    %10 = vector.load %arg8[%c0_7, %c0_8] : memref<1x128xf32, #tpu.memory_space<vmem>>, vector<1x128xf32>
    %cst_9 = arith.constant dense<0xFF800000> : vector<128xf32>
    %11 = vector.multi_reduction <maximumf>, %9, %cst_9 [0] : vector<16x128xf32> to vector<128xf32>
    %12 = vector.shape_cast %11 : vector<128xf32> to vector<1x128xf32>
    %13 = arith.maximumf %10, %12 : vector<1x128xf32>
    %c0_10 = arith.constant 0 : index
    %c0_11 = arith.constant 0 : index
    %14 = vector.load %arg8[%c0_10, %c0_11] : memref<1x128xf32, #tpu.memory_space<vmem>>, vector<1x128xf32>
    tpu.vector_store %arg8[%c0_10, %c0_11], %13 {strides = array<i32>} : memref<1x128xf32, #tpu.memory_space<vmem>>, vector<1x128xf32>,
    %15 = arith.negf %9 : vector<16x128xf32>
    %16 = math.exp %15 : vector<16x128xf32>
    %cst_12 = arith.constant 1.000000e+00 : f32
    %17 = vector.broadcast %cst_12 : f32 to vector<16x128xf32>
    %18 = arith.addf %17, %16 : vector<16x128xf32>
    %19 = arith.divf %17, %18 : vector<16x128xf32>
    %c0_13 = arith.constant 0 : index
    %c0_14 = arith.constant 0 : index
    %20 = vector.load %arg7[%c0_13, %c0_14] : memref<8x128xf32, #tpu.memory_space<vmem>>, vector<8x128xf32>
    %c0_15 = arith.constant 0 : index
    %c0_16 = arith.constant 0 : index
    %21 = vector.load %arg5[%c0_15, %c0_16] : memref<8x16xf32, #tpu.memory_space<vmem>>, vector<8x16xf32>
    %cst_17 = arith.constant dense<0.000000e+00> : vector<8x128xf32>
    %22 = tpu.matmul %21, %19, %cst_17 {dimension_numbers = #tpu.dot_dimension_numbers<[1], [0], [0], [1], [0, 0, 1, 1], [], []>} : vector<8x16xf32>, vector<16x128xf32>, vector<8x128xf32> -> vector<8x128xf32>
    %23 = arith.addf %20, %22 : vector<8x128xf32>
    %c0_18 = arith.constant 0 : index
    %c0_19 = arith.constant 0 : index
    %24 = vector.load %arg7[%c0_18, %c0_19] : memref<8x128xf32, #tpu.memory_space<vmem>>, vector<8x128xf32>
    tpu.vector_store %arg7[%c0_18, %c0_19], %23 {strides = array<i32>} : memref<8x128xf32, #tpu.memory_space<vmem>>, vector<8x128xf32>,
    %c0_i32_20 = arith.constant 0 : i32
    %25 = arith.cmpi eq, %arg1, %c0_i32_20 : i32
    %26 = arith.extui %25 : i1 to i32
    %c0_i32_21 = arith.constant 0 : i32
    %27 = arith.cmpi ne, %26, %c0_i32_21 : i32
    scf.if %27 {
      %c0_22 = arith.constant 0 : index
      %c0_23 = arith.constant 0 : index
      %28 = vector.load %arg7[%c0_22, %c0_23] : memref<8x128xf32, #tpu.memory_space<vmem>>, vector<8x128xf32>
      %29 = vector.extract_strided_slice %28 {offsets = [0, 0], sizes = [1, 128], strides = [1, 1]} : vector<8x128xf32> to vector<1x128xf32>
      %cst_24 = arith.constant 1.000000e+00 : f32
      %30 = vector.broadcast %cst_24 : f32 to vector<1x128xf32>
      %31 = arith.divf %30, %29 : vector<1x128xf32>
      %32 = vector.extract_strided_slice %28 {offsets = [1, 0], sizes = [1, 128], strides = [1, 1]} : vector<8x128xf32> to vector<1x128xf32>
      %33 = arith.mulf %32, %31 : vector<1x128xf32>
      %cst_25 = arith.constant 4.000000e+00 : f32
      %34 = vector.broadcast %cst_25 : f32 to vector<1x128xf32>
      %35 = arith.mulf %33, %34 : vector<1x128xf32>
      %c0_26 = arith.constant 0 : index
      %c0_27 = arith.constant 0 : index
      %c0_28 = arith.constant 0 : index
      %36 = vector.load %arg6[%c0_26, %c0_27, %c0_28] : memref<1x8x128xf32, #tpu.memory_space<vmem>>, vector<1x1x128xf32>
      %37 = vector.shape_cast %36 : vector<1x1x128xf32> to vector<1x128xf32>
      %38 = vector.shape_cast %35 : vector<1x128xf32> to vector<1x1x128xf32>
      tpu.vector_store %arg6[%c0_26, %c0_27, %c0_28], %38 {strides = array<i32>} : memref<1x8x128xf32, #tpu.memory_space<vmem>>, vector<1x1x128xf32>,
      %39 = vector.extract_strided_slice %28 {offsets = [2, 0], sizes = [1, 128], strides = [1, 1]} : vector<8x128xf32> to vector<1x128xf32>
      %40 = arith.mulf %39, %31 : vector<1x128xf32>
      %cst_29 = arith.constant 4.000000e+00 : f32
      %41 = vector.broadcast %cst_29 : f32 to vector<1x128xf32>
      %42 = arith.mulf %40, %41 : vector<1x128xf32>
      %c0_30 = arith.constant 0 : index
      %c1 = arith.constant 1 : index
      %c0_31 = arith.constant 0 : index
      %43 = vector.load %arg6[%c0_30, %c1, %c0_31] : memref<1x8x128xf32, #tpu.memory_space<vmem>>, vector<1x1x128xf32>
      %44 = vector.shape_cast %43 : vector<1x1x128xf32> to vector<1x128xf32>
      %45 = vector.shape_cast %42 : vector<1x128xf32> to vector<1x1x128xf32>
      tpu.vector_store %arg6[%c0_30, %c1, %c0_31], %45 {strides = array<i32>} : memref<1x8x128xf32, #tpu.memory_space<vmem>>, vector<1x1x128xf32>,
      %c0_32 = arith.constant 0 : index
      %c0_33 = arith.constant 0 : index
      %46 = vector.load %arg8[%c0_32, %c0_33] : memref<1x128xf32, #tpu.memory_space<vmem>>, vector<1x128xf32>
      %47 = arith.negf %46 : vector<1x128xf32>
      %48 = math.exp %47 : vector<1x128xf32>
      %cst_34 = arith.constant 1.000000e+00 : f32
      %49 = vector.broadcast %cst_34 : f32 to vector<1x128xf32>
      %50 = arith.addf %49, %48 : vector<1x128xf32>
      %51 = arith.divf %49, %50 : vector<1x128xf32>
      %c0_35 = arith.constant 0 : index
      %c2 = arith.constant 2 : index
      %c0_36 = arith.constant 0 : index
      %52 = vector.load %arg6[%c0_35, %c2, %c0_36] : memref<1x8x128xf32, #tpu.memory_space<vmem>>, vector<1x1x128xf32>
      %53 = vector.shape_cast %52 : vector<1x1x128xf32> to vector<1x128xf32>
      %54 = vector.shape_cast %51 : vector<1x128xf32> to vector<1x1x128xf32>
      tpu.vector_store %arg6[%c0_35, %c2, %c0_36], %54 {strides = array<i32>} : memref<1x8x128xf32, #tpu.memory_space<vmem>>, vector<1x1x128xf32>,
    } else {
    }
    return
  }
  func.func @transform_0(%arg0: i32, %arg1: i32) -> (i32, i32, i32) {
    %c0_i32 = arith.constant 0 : i32
    %c0_i32_0 = arith.constant 0 : i32
    return %arg0, %arg1, %c0_i32 : i32, i32, i32
  }
  func.func @transform_1(%arg0: i32, %arg1: i32) -> (i32, i32) {
    %c0_i32 = arith.constant 0 : i32
    %c0_i32_0 = arith.constant 0 : i32
    %c0_i32_1 = arith.constant 0 : i32
    return %c0_i32, %c0_i32_0 : i32, i32
  }
  func.func @transform_2(%arg0: i32, %arg1: i32) -> (i32, i32) {
    %c0_i32 = arith.constant 0 : i32
    %c0_i32_0 = arith.constant 0 : i32
    %c0_i32_1 = arith.constant 0 : i32
    return %c0_i32, %c0_i32_0 : i32, i32
  }
  func.func @transform_3(%arg0: i32, %arg1: i32) -> (i32, i32) {
    %c0_i32 = arith.constant 0 : i32
    %c0_i32_0 = arith.constant 0 : i32
    return %c0_i32, %arg1 : i32, i32
  }
  func.func @transform_4(%arg0: i32, %arg1: i32) -> (i32, i32, i32) {
    %c0_i32 = arith.constant 0 : i32
    %c0_i32_0 = arith.constant 0 : i32
    %c0_i32_1 = arith.constant 0 : i32
    return %arg0, %c0_i32, %c0_i32_0 : i32, i32, i32
  }
}

</mosaic_0001>

<llo_original>
// kernel: tpu_custom_call.1
$region0: #{tpu_custom_call.1}
  #allocation0 [shape = 'u32[]', space=smem, size = 0x4, offset = 0x4, fixed_abs, tag = 'smem constant byte address 0x4 - core index']
  #allocation1 [shape = 'u32[144,128]{1,0:T(1,128)}', space=vmem, size = 0x12000, scoped, tag = 'internal scratch']
  #allocation2 [shape = 'f32[8,128]{1,0:T(8,128)}', space=vmem, size = 0x1000, scoped, tag = 'scratch operand']
  #allocation3 [shape = 'f32[1,128]{1,0:T(1,128)}', space=vmem, size = 0x200, scoped, tag = 'scratch operand']
  %s0 = inlined_call_operand.hbm [shape: bf16[2,16,64], index: 0, kind: input, shape index: {}]
  %s1 = inlined_call_operand.hbm [shape: bf16[64,128], index: 1, kind: input, shape index: {}]
  %s2 = inlined_call_operand.vmem [shape: f32[1,128], index: 2, kind: input, shape index: {}]
  %s3 = inlined_call_operand.hbm [shape: f32[8,16], index: 3, kind: input, shape index: {}]
  %s4 = inlined_call_operand.hbm [shape: f32[2,8,128], index: 4, kind: output, shape index: {}]
  %s5 = sld [smem:[#allocation0]]
  $region69: #{tpu_custom_call.1} parent=0
    _
  %s7 = ssub.s32 1, %s5
  %s8 = scalar_select 0, %s7, %s5
  $region1: #{tpu_custom_call.1} parent=0
    #allocation4 [shape = 'u8[8192]{0}', space=vmem, size = 0x2000, scoped, tag = 'input window, operand 0']
    #allocation5 [shape = 's32[2]{0}', space=sflag, size = 0x8, scoped, tag = 'scoped memory for tpu_custom_call.1']
    #allocation6 [shape = 's32[2]{0}', space=sflag, size = 0x8, scoped, tag = 'scoped memory for tpu_custom_call.1']
    #allocation7 [shape = 'u8[16384]{0}', space=vmem, size = 0x4000, scoped, tag = 'input window, operand 1, single buffered']
    #allocation8 [shape = 's32[1]{0}', space=sflag, size = 0x4, scoped, tag = 'scoped memory for tpu_custom_call.1']
    #allocation9 [shape = 'u8[4096]{0}', space=vmem, size = 0x1000, scoped, tag = 'input window, operand 3, single buffered']
    #allocation10 [shape = 'u8[8192]{0}', space=vmem, size = 0x2000, scoped, tag = 'output window, operand 0']
    %9 = vsyncpa [#allocation5], 0
    %s10 = scalar_lea.sflag [#allocation5], 1
    %11 = vsyncpa %s10, 0
    %12 = vsyncpa [#allocation8], 0
    %13 = vsyncpa [#allocation6], 0
    %s14 = scalar_lea.sflag [#allocation6], 1
    %15 = vsyncpa %s14, 0
    loop: start=0, step=1, limit=4
    $region2: #{tpu_custom_call.1} parent=1 // loop_pre_header
      _
    $region3: #{tpu_custom_call.1} parent=1 // loop_header
      %s17 = sphi 0, %s21
      %p18 = scmp.ge.s32.totalorder %s17, 4
      %s24 = sphi 0, %s36
      %s25 = sphi 0, %s32
      %s26 = sphi 0, %s24
      %s27 = sphi 0, %s25
      %s28 = sphi 0, %s26
      %s29 = sphi 0, %s27
      %s41 = sphi 0, %s43
      %s44 = sphi 0, %s41
      %s45 = sphi 0, %s44
      %s61 = sphi 0, %s45
      %s65 = sphi 0, %s65
      %s67 = sphi 0, %s65
      %s68 = sphi 0, %s67
      %s82 = sphi 0, %s68
      %s86 = sphi 0, %s86
      %s88 = sphi 0, %s86
      %s89 = sphi 0, %s88
      %s103 = sphi 0, %s89
      %s109 = sphi 0, %s111
      %s112 = sphi 0, %s109
      %s113 = sphi 0, %s112
      %s129 = sphi 0, %s113
      %s135 = sphi 0, %s137
      %s138 = sphi 0, %s135
      %s139 = sphi 0, %s138
      %s155 = sphi 0, %s139
    $region4: #{tpu_custom_call.1} parent=1 // loop_header_branch
      %20 = sbr.rel (%p18) target = $region8
    $region5: #{tpu_custom_call.1} parent=1 // loop_body
      %s22 = ssub.s32 %s17, 1
      %s23 = ssub.s32 %s17, 2
      %s30 = sadd.s32 1, %s25
      %p31 = scmp.ge.s32.totalorder %s30, 1
      %s32 = scalar_select %p31, 0, %s30
      %s33 = sadd.s32 1, %s24
      %s34 = scalar_select %p31, %s33, %s24
      %p35 = scmp.ge.s32.totalorder %s34, 2
      %s36 = scalar_select %p35, 0, %s34
      %s37 = ssub.s32 %s24, %s36
      %s38 = ssub.s32 %s25, %s32
      %s39 = sor.u32 %s37, %s38
      %p40 = scmp.eq.s32.totalorder %s39, 0
      %s42 = sadd.s32 %s41, 1
      %s43 = scalar_select %p40, %s41, %s42
      %p46 = pneg %p40
      %p47 = scmp.eq.s32.totalorder %s17, 1
      %p48 = por %p46, %p47
      %p49 = scmp.ne.s32.totalorder %s41, %s44
      %p50 = scmp.eq.s32.totalorder %s17, 0
      %p51 = por %p49, %p50
      %p52 = scmp.ne.s32.totalorder %s41, %s44
      %p53 = scmp.eq.s32.totalorder %s22, 1
      %p54 = por %p52, %p53
      %p55 = scmp.ne.s32.totalorder %s44, %s45
      %p56 = scmp.eq.s32.totalorder %s22, 0
      %p57 = por %p55, %p56
      %p58 = scmp.ne.s32.totalorder %s44, %s45
      %p59 = scmp.eq.s32.totalorder %s23, 1
      %p60 = por %p58, %p59
      %p62 = scmp.ne.s32.totalorder %s45, %s61
      %p63 = scmp.eq.s32.totalorder %s23, 0
      %p64 = por %p62, %p63
      %s66 = sadd.s32 %s65, 1
      %p69 = scmp.eq.s32.totalorder %s17, 1
      %p70 = scmp.ne.s32.totalorder %s65, %s67
      %p71 = scmp.eq.s32.totalorder %s17, 0
      %p72 = por %p70, %p71
      %p73 = scmp.ne.s32.totalorder %s65, %s67
      %p74 = scmp.eq.s32.totalorder %s22, 1
      %p75 = por %p73, %p74
      %p76 = scmp.ne.s32.totalorder %s67, %s68
      %p77 = scmp.eq.s32.totalorder %s22, 0
      %p78 = por %p76, %p77
      %p79 = scmp.ne.s32.totalorder %s67, %s68
      %p80 = scmp.eq.s32.totalorder %s23, 1
      %p81 = por %p79, %p80
      %p83 = scmp.ne.s32.totalorder %s68, %s82
      %p84 = scmp.eq.s32.totalorder %s23, 0
      %p85 = por %p83, %p84
      %s87 = sadd.s32 %s86, 1
      %p90 = scmp.eq.s32.totalorder %s17, 1
      %p91 = scmp.ne.s32.totalorder %s86, %s88
      %p92 = scmp.eq.s32.totalorder %s17, 0
      %p93 = por %p91, %p92
      %p94 = scmp.ne.s32.totalorder %s86, %s88
      %p95 = scmp.eq.s32.totalorder %s22, 1
      %p96 = por %p94, %p95
      %p97 = scmp.ne.s32.totalorder %s88, %s89
      %p98 = scmp.eq.s32.totalorder %s22, 0
      %p99 = por %p97, %p98
      %p100 = scmp.ne.s32.totalorder %s88, %s89
      %p101 = scmp.eq.s32.totalorder %s23, 1
      %p102 = por %p100, %p101
      %p104 = scmp.ne.s32.totalorder %s89, %s103
      %p105 = scmp.eq.s32.totalorder %s23, 0
      %p106 = por %p104, %p105
      %s107 = ssub.s32 %s25, %s32
      %p108 = scmp.eq.s32.totalorder %s107, 0
      %s110 = sadd.s32 %s109, 1
      %s111 = scalar_select %p108, %s109, %s110
      %p114 = pneg %p108
      %p115 = scmp.eq.s32.totalorder %s17, 1
      %p116 = por %p114, %p115
      %p117 = scmp.ne.s32.totalorder %s109, %s112
      %p118 = scmp.eq.s32.totalorder %s17, 0
      %p119 = por %p117, %p118
      %p120 = scmp.ne.s32.totalorder %s109, %s112
      %p121 = scmp.eq.s32.totalorder %s22, 1
      %p122 = por %p120, %p121
      %p123 = scmp.ne.s32.totalorder %s112, %s113
      %p124 = scmp.eq.s32.totalorder %s22, 0
      %p125 = por %p123, %p124
      %p126 = scmp.ne.s32.totalorder %s112, %s113
      %p127 = scmp.eq.s32.totalorder %s23, 1
      %p128 = por %p126, %p127
      %p130 = scmp.ne.s32.totalorder %s113, %s129
      %p131 = scmp.eq.s32.totalorder %s23, 0
      %p132 = por %p130, %p131
      %s133 = ssub.s32 %s24, %s36
      %p134 = scmp.eq.s32.totalorder %s133, 0
      %s136 = sadd.s32 %s135, 1
      %s137 = scalar_select %p134, %s135, %s136
      %p140 = pneg %p134
      %p141 = scmp.eq.s32.totalorder %s17, 1
      %p142 = por %p140, %p141
      %p143 = scmp.ne.s32.totalorder %s135, %s138
      %p144 = scmp.eq.s32.totalorder %s17, 0
      %p145 = por %p143, %p144
      %p146 = scmp.ne.s32.totalorder %s135, %s138
      %p147 = scmp.eq.s32.totalorder %s22, 1
      %p148 = por %p146, %p147
      %p149 = scmp.ne.s32.totalorder %s138, %s139
      %p150 = scmp.eq.s32.totalorder %s22, 0
      %p151 = por %p149, %p150
      %p152 = scmp.ne.s32.totalorder %s138, %s139
      %p153 = scmp.eq.s32.totalorder %s23, 1
      %p154 = por %p152, %p153
      %p156 = scmp.ne.s32.totalorder %s139, %s155
      %p157 = scmp.eq.s32.totalorder %s23, 0
      %p158 = por %p156, %p157
      %p159 = scmp.le.s32.totalorder 1, %s17
      %p160 = scmp.lt.s32.totalorder %s17, 3
      %p161 = pnand %p159, %p160
      %p162 = pneg %p161
      // Predicated region
      $region9: #{tpu_custom_call.1} parent=5 // pred_check
        _
      $region10: #{tpu_custom_call.1} parent=5 // pred_check_branch
        %164 = sbr.rel (%p161) target = $region12
      $region11: #{tpu_custom_call.1} parent=5 // pred_region
        %s165 = ssub.s32 %s17, 1
        // Predicated region
        $region13: #{tpu_custom_call.1} parent=11 // pred_check
          %p166 = pneg %p78
        $region14: #{tpu_custom_call.1} parent=11 // pred_check_branch
          %168 = sbr.rel (%p166) target = $region16
        $region15: #{tpu_custom_call.1} parent=11 // pred_region
          %s170 = ssub.s32 512, 512
          %171 = vsyncadd [#allocation8], %s170
          %s172 = sshll.u32 [#allocation7], 4
          %s173 = int_to_ptr.vmem [resolvable:$true] %s172
          %178 = dma.hbm_to_vmem [thread:$0]  %s1, 512, %s173, [#allocation8], 64, 64, 4
        $region16: #{tpu_custom_call.1} parent=11 // pred_fallthru
          _
        // Predicated region
        $region17: #{tpu_custom_call.1} parent=11 // pred_check
          %p179 = pneg %p99
        $region18: #{tpu_custom_call.1} parent=11 // pred_check_branch
          %181 = sbr.rel (%p179) target = $region20
        $region19: #{tpu_custom_call.1} parent=11 // pred_region
          _
        $region20: #{tpu_custom_call.1} parent=11 // pred_fallthru
          _
        // Predicated region
        $region21: #{tpu_custom_call.1} parent=11 // pred_check
          %p182 = pneg %p125
        $region22: #{tpu_custom_call.1} parent=11 // pred_check_branch
          %184 = sbr.rel (%p182) target = $region24
        $region23: #{tpu_custom_call.1} parent=11 // pred_region
          %s186 = ssub.s32 128, 128
          %187 = vsyncadd [#allocation8], %s186
          %s188 = smul.addr %s27, 128
          %s189 = scalar_lea.hbm %s3, %s188
          %s191 = sshll.u32 [#allocation9], 4
          %s192 = int_to_ptr.vmem [resolvable:$true] %s191
          %194 = dma.hbm_to_vmem [thread:$0]  %s189, 128, %s192, [#allocation8]
        $region24: #{tpu_custom_call.1} parent=11 // pred_fallthru
          _
      $region12: #{tpu_custom_call.1} parent=5 // pred_fallthru
        _
      %p195 = scmp.lt.s32.totalorder %s17, 2
      // Predicated region
      $region25: #{tpu_custom_call.1} parent=5 // pred_check
        %p196 = pneg %p195
      $region26: #{tpu_custom_call.1} parent=5 // pred_check_branch
        %198 = sbr.rel (%p196) target = $region28
      $region27: #{tpu_custom_call.1} parent=5 // pred_region
        // Predicated region
        $region29: #{tpu_custom_call.1} parent=27 // pred_check
          %p199 = pneg %p51
        $region30: #{tpu_custom_call.1} parent=27 // pred_check_branch
          %201 = sbr.rel (%p199) target = $region32
        $region31: #{tpu_custom_call.1} parent=27 // pred_region
          %s202 = sand.u32 %s41, 1
          %s203 = scalar_lea.sflag [#allocation5], %s202
          %s204 = sand.u32 %s41, 1
          %s205 = smul.addr %s204, 8
          %s206 = scalar_lea.vmem [#allocation4], %s205
          %s207 = smul.u32 2, %s25
          %s209 = ssub.s32 128, 128
          %210 = vsyncadd %s203, %s209
          %s211 = smul.addr %s24, 2
          %s212 = sadd.s32 %s207, %s211
          %s213 = smul.addr %s212, 64
          %s214 = scalar_lea.hbm %s0, %s213
          %s215 = sshll.u32 %s206, 4
          %s216 = int_to_ptr.vmem [resolvable:$true] %s215
          %221 = dma.hbm_to_vmem [thread:$0]  %s214, 128, %s216, %s203, 64, 64, 4
        $region32: #{tpu_custom_call.1} parent=27 // pred_fallthru
          _
      $region28: #{tpu_custom_call.1} parent=5 // pred_fallthru
        _
      %p222 = scmp.le.s32.totalorder 1, %s17
      %p223 = scmp.lt.s32.totalorder %s17, 3
      %p224 = pnand %p222, %p223
      %p225 = pneg %p224
      // Predicated region
      $region33: #{tpu_custom_call.1} parent=5 // pred_check
        _
      $region34: #{tpu_custom_call.1} parent=5 // pred_check_branch
        %227 = sbr.rel (%p224) target = $region36
      $region35: #{tpu_custom_call.1} parent=5 // pred_region
        %s228 = ssub.s32 %s17, 1
        %s229 = sand.u32 %s44, 1
        %s230 = scalar_lea.sflag [#allocation5], %s229
        %s231 = sand.u32 %s44, 1
        %s232 = smul.addr %s231, 8
        %s233 = scalar_lea.vmem [#allocation4], %s232
        // Predicated region
        $region37: #{tpu_custom_call.1} parent=35 // pred_check
          %p234 = pneg %p57
        $region38: #{tpu_custom_call.1} parent=35 // pred_check_branch
          %236 = sbr.rel (%p234) target = $region40
        $region39: #{tpu_custom_call.1} parent=35 // pred_region
          %237 = dma.done %s230, 128
        $region40: #{tpu_custom_call.1} parent=35 // pred_fallthru
          _
        // Predicated region
        $region41: #{tpu_custom_call.1} parent=35 // pred_check
          %p238 = pneg %p78
        $region42: #{tpu_custom_call.1} parent=35 // pred_check_branch
          %240 = sbr.rel (%p238) target = $region44
        $region43: #{tpu_custom_call.1} parent=35 // pred_region
          %241 = dma.done [#allocation8], 512
        $region44: #{tpu_custom_call.1} parent=35 // pred_fallthru
          _
        // Predicated region
        $region45: #{tpu_custom_call.1} parent=35 // pred_check
          %p242 = pneg %p125
        $region46: #{tpu_custom_call.1} parent=35 // pred_check_branch
          %244 = sbr.rel (%p242) target = $region48
        $region47: #{tpu_custom_call.1} parent=35 // pred_region
          %245 = dma.done [#allocation8], 128
        $region48: #{tpu_custom_call.1} parent=35 // pred_fallthru
          _
        %s246 = sand.u32 %s44, 1
        %s247 = scalar_lea.sflag [#allocation5], %s246
        %s248 = sand.u32 %s44, 1
        %s249 = smul.addr %s248, 8
        %s250 = scalar_lea.vmem [#allocation4], %s249
        %p251 = pneg %p57
        %p252 = pneg %p54
        %p253 = pneg %p78
        %p254 = pneg %p75
        %p255 = pneg %p99
        %p256 = pneg %p96
        %p257 = pneg %p125
        %p258 = pneg %p122
        %p259 = pneg %p151
        %p260 = pneg %p148
        %s261 = sand.u32 %s138, 1
        %s262 = scalar_lea.sflag [#allocation6], %s261
        %s263 = sand.u32 %s138, 1
        %s264 = smul.addr %s263, 8
        %s265 = scalar_lea.vmem [#allocation10], %s264
        %s266 = smul.u32 2, %s27
        %p268 = scmp.eq.s32.totalorder %s27, 0
        // Predicated region
        $region49: #{tpu_custom_call.1} parent=35 // pred_check
          %p269 = pneg %p268
        $region50: #{tpu_custom_call.1} parent=35 // pred_check_branch
          %271 = sbr.rel (%p269) target = $region52
        $region51: #{tpu_custom_call.1} parent=35 // pred_region
          %272 = vst [vmem:[#allocation2] sm:$0xff] 0.0
          %273 = vst [vmem:[#allocation3] sm:$0x1] -inf
        $region52: #{tpu_custom_call.1} parent=35 // pred_fallthru
          _
        %v274 = vld [vmem:[%s233] sm:$0xf]
        %v275 = vld [vmem:[%s233 + $0x4] sm:$0xf]
        %v276 = vld [vmem:[#allocation7] sm:$0xf]
        %v277 = vld [vmem:[#allocation7 + $0x4] sm:$0xf]
        %v278 = vld [vmem:[#allocation7 + $0x8] sm:$0xf]
        %v279 = vld [vmem:[#allocation7 + $0xc] sm:$0xf]
        %v280 = vld [vmem:[#allocation7 + $0x10] sm:$0xf]
        %v281 = vld [vmem:[#allocation7 + $0x14] sm:$0xf]
        %v282 = vld [vmem:[#allocation7 + $0x18] sm:$0xf]
        %v283 = vld [vmem:[#allocation7 + $0x1c] sm:$0xf]
        %v284 = vld [vmem:[%s2] sm:$0x1]
        %v286 = vlaneseq
        %v287 = vshrl.u32 %v286, 7
        %v288 = vsub.s32 0, %v287
        %v289 = vrot.slane %v284, %v288
        %v293 = vunpack.c.l.b16 %v274
        %v294 = vunpack.c.l.b16 %v275
        %v295 = vpack.c.b16 %v294, %v293
        %v304 = vunpack.c.l.b16 %v276
        %v305 = vunpack.c.l.b16 %v277
        %v306 = vunpack.c.l.b16 %v278
        %v307 = vunpack.c.l.b16 %v279
        %v308 = vunpack.c.l.b16 %v280
        %v309 = vunpack.c.l.b16 %v281
        %v310 = vunpack.c.l.b16 %v282
        %v311 = vunpack.c.l.b16 %v283
        %v312 = vpack.c.b16 %v305, %v304
        %v313 = vpack.c.b16 %v307, %v306
        %v314 = vpack.c.b16 %v309, %v308
        %v315 = vpack.c.b16 %v311, %v310
        %vm320 = vcmask 523264
        %v322 = vsel %vm320, %v295, 0
        %324 = vmatprep.subr.bf16.mxu0 0
        %325 = vmatpush1.bf16.msra.mxu0 0
        %326 = vmatprep.subr.bf16.mxu0 0
        %327 = vmatpush1.bf16.msra.mxu0 0
        %328 = vmatprep.subr.bf16.mxu0 0
        %329 = vmatpush1.bf16.msra.mxu0 0
        %330 = vmatprep.subr.bf16.mxu0 0
        %331 = vmatpush1.bf16.msra.mxu0 0
        %332 = vmatprep.subr.bf16.mxu0 0
        %333 = vmatpush1.bf16.msra.mxu0 %v315
        %334 = vmatprep.subr.bf16.mxu0 0
        %335 = vmatpush1.bf16.msra.mxu0 %v314
        %336 = vmatprep.subr.bf16.mxu0 0
        %337 = vmatpush1.bf16.msra.mxu0 %v313
        %338 = vmatprep.subr.bf16.mxu0 0
        %339 = vmatpush1.bf16.msra.mxu0 %v312
        %340 = vmatprep.subr.bf16.mxu0 0
        %341 = vmatpush2.bf16.msra.mxu0 0
        %342 = vmatprep.subr.bf16.mxu0 0
        %343 = vmatpush2.bf16.msra.mxu0 0
        %344 = vmatprep.subr.bf16.mxu0 0
        %345 = vmatpush2.bf16.msra.mxu0 0
        %346 = vmatprep.subr.bf16.mxu0 0
        %347 = vmatpush2.bf16.msra.mxu0 0
        %348 = vmatprep.subr.bf16.mxu0 0
        %349 = vmatpush2.bf16.msra.mxu0 0
        %350 = vmatprep.subr.bf16.mxu0 0
        %351 = vmatpush2.bf16.msra.mxu0 0
        %352 = vmatprep.subr.bf16.mxu0 0
        %353 = vmatpush2.bf16.msra.mxu0 0
        %354 = vmatprep.subr.bf16.mxu0 0
        %355 = vmatpush2.bf16.msra.mxu0 0
        %356 = vmatprep.mubr.bf16.mxu0 0
        %357 = vmatmul.mubr.bf16.gmra.mxu0 %v322
        %v358 = vpop.f32.mrf.mxu0
        %v359 = vadd.f32 %v289, %v358
        %v360 = vpop.f32.mrf.mxu0
        %v361 = vpop.f32.mrf.mxu0
        %v362 = vadd.f32 %v289, %v361
        %v363 = vpop.f32.mrf.mxu0
        %364 = vdwg.mxu0
        %v365 = vld [vmem:[#allocation3] sm:$0x1]
        %v366 = vmax.f32 %v359, %v362
        %v367 = vrot.slane %v366, 4
        %v368 = vmax.f32 %v366, %v367
        %v369 = vrot.slane %v368, 2
        %v370 = vmax.f32 %v368, %v369
        %v371 = vrot.slane %v370, 1
        %v372 = vmax.f32 %v370, %v371
        %v373 = vmax.f32 %v365, %v372
        %374 = vst [vmem:[#allocation3] sm:$0x1] %v373
        %v375 = vxor.u32 %v359, 2147483648
        %v376 = vxor.u32 %v362, 2147483648
        %v377 = vmul.f32 %v375, 1.442695
        %v378 = vpow.pop %v377
        %v379 = vmul.f32 %v376, 1.442695
        %v380 = vpow.pop %v379
        %v381 = vadd.f32 %v378, 1.0
        %v382 = vadd.f32 %v380, 1.0
        %v383 = vrcp.pop %v381
        %v384 = vmul.f32 1.0, %v383
        %v385 = vrcp.pop %v382
        %v386 = vmul.f32 1.0, %v385
        %v387 = vld [vmem:[#allocation2] sm:$0xff]
        %v388 = vld [vmem:[#allocation9] sm:$0xff]
        %vm389 = vcmask 130048
        %v391 = vsel %vm389, %v388, 0
        %393 = vmatprep.subr.mxu0 0.0
        %394 = vmatpush1.msra.mxu0 0.0
        %395 = vmatprep.subr.mxu0 0.0
        %396 = vmatpush1.msra.mxu0 0.0
        %397 = vmatprep.subr.mxu0 0.0
        %398 = vmatpush1.msra.mxu0 0.0
        %399 = vmatprep.subr.mxu0 0.0
        %400 = vmatpush1.msra.mxu0 0.0
        %401 = vmatprep.subr.mxu0 0.0
        %402 = vmatpush1.msra.mxu0 0.0
        %403 = vmatprep.subr.mxu0 0.0
        %404 = vmatpush1.msra.mxu0 0.0
        %405 = vmatprep.subr.mxu0 0.0
        %406 = vmatpush1.msra.mxu0 0.0
        %407 = vmatprep.subr.mxu0 0.0
        %408 = vmatpush1.msra.mxu0 0.0
        %409 = vmatprep.subr.mxu0 0.0
        %410 = vmatpush1.msra.mxu0 0.0
        %411 = vmatprep.subr.mxu0 0.0
        %412 = vmatpush1.msra.mxu0 0.0
        %413 = vmatprep.subr.mxu0 0.0
        %414 = vmatpush1.msra.mxu0 0.0
        %415 = vmatprep.subr.mxu0 0.0
        %416 = vmatpush1.msra.mxu0 0.0
        %417 = vmatprep.subr.mxu0 0.0
        %418 = vmatpush1.msra.mxu0 0.0
        %419 = vmatprep.subr.mxu0 0.0
        %420 = vmatpush1.msra.mxu0 0.0
        %421 = vmatprep.subr.mxu0 0.0
        %422 = vmatpush1.msra.mxu0 %v386
        %423 = vmatprep.subr.mxu0 0.0
        %424 = vmatpush1.msra.mxu0 %v384
        %425 = vmatprep.subr.mxu0 0.0
        %426 = vmatpush2.msra.mxu0 0.0
        %427 = vmatprep.subr.mxu0 0.0
        %428 = vmatpush2.msra.mxu0 0.0
        %429 = vmatprep.subr.mxu0 0.0
        %430 = vmatpush2.msra.mxu0 0.0
        %431 = vmatprep.subr.mxu0 0.0
        %432 = vmatpush2.msra.mxu0 0.0
        %433 = vmatprep.subr.mxu0 0.0
        %434 = vmatpush2.msra.mxu0 0.0
        %435 = vmatprep.subr.mxu0 0.0
        %436 = vmatpush2.msra.mxu0 0.0
        %437 = vmatprep.subr.mxu0 0.0
        %438 = vmatpush2.msra.mxu0 0.0
        %439 = vmatprep.subr.mxu0 0.0
        %440 = vmatpush2.msra.mxu0 0.0
        %441 = vmatprep.subr.mxu0 0.0
        %442 = vmatpush2.msra.mxu0 0.0
        %443 = vmatprep.subr.mxu0 0.0
        %444 = vmatpush2.msra.mxu0 0.0
        %445 = vmatprep.subr.mxu0 0.0
        %446 = vmatpush2.msra.mxu0 0.0
        %447 = vmatprep.subr.mxu0 0.0
        %448 = vmatpush2.msra.mxu0 0.0
        %449 = vmatprep.subr.mxu0 0.0
        %450 = vmatpush2.msra.mxu0 0.0
        %451 = vmatprep.subr.mxu0 0.0
        %452 = vmatpush2.msra.mxu0 0.0
        %453 = vmatprep.subr.mxu0 0.0
        %454 = vmatpush2.msra.mxu0 0.0
        %455 = vmatprep.subr.mxu0 0.0
        %456 = vmatpush2.msra.mxu0 0.0
        %457 = vmatprep.mubr.f32.mxu0 0.0
        %458 = vmatmul.mubr.f32.gmra.mxu0 %v391
        %v459 = vpop.f32.mrf.mxu0
        %v460 = vadd.f32 0.0, %v459
        %v461 = vpop.f32.mrf.mxu0
        %462 = vdwg.mxu0
        %v463 = vadd.f32 %v387, %v460
        %464 = vst [vmem:[#allocation2] sm:$0xff] %v463
        // Predicated region
        $region53: #{tpu_custom_call.1} parent=35 // pred_check
          %p465 = pneg %p268
        $region54: #{tpu_custom_call.1} parent=35 // pred_check_branch
          %467 = sbr.rel (%p465) target = $region56
        $region55: #{tpu_custom_call.1} parent=35 // pred_region
          %v468 = vld [vmem:[#allocation2] sm:$0xff]
          %v469 = vrcp.pop %v468
          %v470 = vmul.f32 1.0, %v469
          %v472 = vrot.slane %v470, 7
          %v474 = vmul.f32 %v468, %v472
          %v475 = vmul.f32 %v474, 4.0
          %476 = vst [vmem:[%s265 - $0x1] sm:$0x2] %v475
          %v477 = vrot.slane %v470, 6
          %v479 = vmul.f32 %v468, %v477
          %v480 = vmul.f32 %v479, 4.0
          %481 = vst [vmem:[%s265 - $0x1] sm:$0x4] %v480
          %v482 = vld [vmem:[#allocation3] sm:$0x1]
          %v483 = vxor.u32 %v482, 2147483648
          %v484 = vmul.f32 %v483, 1.442695
          %v485 = vpow.pop %v484
          %v486 = vadd.f32 %v485, 1.0
          %v487 = vrcp.pop %v486
          %v488 = vmul.f32 1.0, %v487
          %489 = vst [vmem:[%s265 + $0x2] sm:$0x1] %v488
        $region56: #{tpu_custom_call.1} parent=35 // pred_fallthru
          _
        %s490 = sand.u32 %s138, 1
        %s491 = scalar_lea.sflag [#allocation6], %s490
        %s492 = sand.u32 %s138, 1
        %s493 = smul.addr %s492, 8
        %s494 = scalar_lea.vmem [#allocation10], %s493
        // Predicated region
        $region57: #{tpu_custom_call.1} parent=35 // pred_check
          %p495 = pneg %p148
        $region58: #{tpu_custom_call.1} parent=35 // pred_check_branch
          %497 = sbr.rel (%p495) target = $region60
        $region59: #{tpu_custom_call.1} parent=35 // pred_region
          %s499 = ssub.s32 128, 128
          %500 = vsyncadd %s491, %s499
          %s501 = smul.addr %s26, 128
          %s502 = scalar_lea.hbm %s4, %s501
          %s504 = sshll.u32 %s494, 4
          %s505 = int_to_ptr.vmem [resolvable:$true] %s504
          %507 = dma.vmem_to_hbm [thread:$0]  %s505, 128, %s502, %s491
        $region60: #{tpu_custom_call.1} parent=35 // pred_fallthru
          _
      $region36: #{tpu_custom_call.1} parent=5 // pred_fallthru
        _
      %p508 = scmp.le.s32.totalorder 2, %s17
      // Predicated region
      $region61: #{tpu_custom_call.1} parent=5 // pred_check
        %p509 = pneg %p508
      $region62: #{tpu_custom_call.1} parent=5 // pred_check_branch
        %511 = sbr.rel (%p509) target = $region64
      $region63: #{tpu_custom_call.1} parent=5 // pred_region
        %s512 = ssub.s32 %s17, 2
        // Predicated region
        $region65: #{tpu_custom_call.1} parent=63 // pred_check
          %p513 = pneg %p154
        $region66: #{tpu_custom_call.1} parent=63 // pred_check_branch
          %515 = sbr.rel (%p513) target = $region68
        $region67: #{tpu_custom_call.1} parent=63 // pred_region
          %s516 = sand.u32 %s139, 1
          %s517 = scalar_lea.sflag [#allocation6], %s516
          %s518 = sand.u32 %s139, 1
          %s519 = smul.addr %s518, 8
          %s520 = scalar_lea.vmem [#allocation10], %s519
          %521 = dma.done %s517, 128
        $region68: #{tpu_custom_call.1} parent=63 // pred_fallthru
          _
      $region64: #{tpu_custom_call.1} parent=5 // pred_fallthru
        _
    $region6: #{tpu_custom_call.1} parent=1 // loop_footer
      %s21 = sadd.s32 1, %s17
    $region7: #{tpu_custom_call.1} parent=1 // loop_footer_branch
      %16 = sbr.rel target = $region3
    $region8: #{tpu_custom_call.1} parent=1 // loop_exit
      _
    %522 = vsyncpa [#allocation5], 1
    %s523 = scalar_lea.sflag [#allocation5], 1
    %524 = vsyncpa %s523, 1
    %525 = vsyncpa [#allocation8], 1
    %526 = vsyncpa [#allocation6], 1
    %s527 = scalar_lea.sflag [#allocation6], 1
    %528 = vsyncpa %s527, 1

</llo_original>
